<compile_context>
chip_gen: v7x
topology: tpu7x:2x2x1
jax: 0.10.0
libtpu: 0.0.40
codegen_flags: <defaults>
</compile_context>

<pallas_src>
from functools import partial

import numpy as np
import jax
import jax.numpy as jnp
from jax import lax
from jax.experimental import pallas as pl
from jax.experimental.pallas import tpu as pltpu


# ----------------------------------------------------------------------------
# Static helpers
# ----------------------------------------------------------------------------
def _round_up(x, m):
    return ((x + m - 1) // m) * m


def _tap_groups(lctx, rctx, sub):
    """Context taps d = 0..nctx-1 grouped by their stride-folded row offset q.

    Tap d <-> context c = d - lctx.  With x_r[b, g, r*F:(r+1)*F] == feats[b, g*sub + r, :],
    the unclamped source of output row t for tap d is row (t + q), lane slice r:
        q = c // sub   (floor),   r = c % sub   (non-negative).
    Returns [(q, [r, ...]), ...] with taps kept in output-lane order.
    """
    groups = []
    for d in range(lctx + rctx + 1):
        c = d - lctx
        q, r = c // sub, c % sub
        if groups and groups[-1][0] == q:
            groups[-1][1].append(r)
        else:
            groups.append((q, [r]))
    return groups


def _choose_tiles(To, tile_rows, qL, qR, align, prefer_min_tiles):
    """Balanced output-row tiles.

    Guarantees (for n_j >= 2):  tt % align == 0,  tt >= qL,  and the last tile
    holds at least max(qR, 1) rows -- which keeps every interior-tile window
    read strictly inside [0, G).
    """
    def valid(n_j, tt):
        if n_j == 1:
            return True
        last = To - (n_j - 1) * tt
        return (tt >= max(qL, 1)) and (last >= max(qR, 1)) and (last <= tt)

    n_start = max(1, -(-To // max(tile_rows, align)))
    n_start = max(n_start, prefer_min_tiles)
    for n_j in range(n_start, 0, -1):
        if n_j == 1:
            return 1, To
        tt = _round_up(-(-To // n_j), align)
        if n_j * tt >= To and valid(n_j, tt):
            return n_j, tt
    return 1, To


# ----------------------------------------------------------------------------
# Pallas kernel: splice + subsample for one (batch row, output time tile).
# ----------------------------------------------------------------------------
def _splice_kernel(x_ref, o_ref, *, F, sub, G, tt, n_j, rc_main, groups):
    """
    x_ref: (G, sub*F)       stride-folded input slab of one batch row (VMEM resident)
    o_ref: (tt, nctx*F)     spliced + subsampled output tile
    """
    j = pl.program_id(1)

    # ---- interior chunk: every read is in-bounds, no clamping ---------------
    def interior_chunk(row0, rc):
        # row0: absolute output row (may be dynamic), rc: static row count.
        parts = []
        for q, rs in groups:
            win = x_ref[pl.ds(row0 + q, rc), :]          # (rc, sub*F) contiguous
            for r in rs:
                parts.append(win[:, r * F:(r + 1) * F])
        return parts[0] if len(parts) == 1 else jnp.concatenate(parts, axis=-1)

    # ---- edge chunk: static row range, handles left/right clamping ----------
    def edge_chunk(a, rc):
        # a: static absolute output row of the first row of this chunk.
        frame0 = x_ref[0:1, 0:F]                         # feats[..., 0, :]
        frameL = x_ref[G - 1:G, (sub - 1) * F:sub * F]   # feats[..., T'-1, :]
        parts = []
        for q, rs in groups:
            lo = max(0, -q)          # first un-clamped output row for this offset
            hi = G - max(q, 0)       # first right-clamped output row
            lo_t, hi_t = max(a, lo), min(a + rc, hi)
            n_top = max(0, min(a + rc, lo) - a)
            n_mid = max(0, hi_t - lo_t)
            n_bot = rc - n_top - n_mid
            win = x_ref[pl.ds(lo_t + q, n_mid), :] if n_mid else None
            for r in rs:
                pieces = []
                if n_top:
                    pieces.append(jnp.broadcast_to(frame0, (n_top, F)))
                if n_mid:
                    pieces.append(win[:, r * F:(r + 1) * F])
                if n_bot:
                    pieces.append(jnp.broadcast_to(frameL, (n_bot, F)))
                parts.append(pieces[0] if len(pieces) == 1
                             else jnp.concatenate(pieces, axis=0))
        return parts[0] if len(parts) == 1 else jnp.concatenate(parts, axis=-1)

    def emit_edge_tile(base):
        # Statically unrolled chunk loop; bounds-safe for first/last/single tile
        # (phantom rows past To are filled with the last frame and dropped on
        #  writeback of the partial output block).
        r0 = 0
        while r0 < tt:
            rc = min(rc_main, tt - r0)
            o_ref[r0:r0 + rc, :] = edge_chunk(base + r0, rc)
            r0 += rc

    def emit_interior_tile():
        base = j * tt
        n_full, rem = tt // rc_main, tt % rc_main

        def body(c, carry):
            r0 = pl.multiple_of(c * rc_main, 8)
            o_ref[pl.ds(r0, rc_main), :] = interior_chunk(base + r0, rc_main)
            return carry

        if n_full > 0:
            lax.fori_loop(0, n_full, body, 0, unroll=True)
        if rem:
            r0 = n_full * rc_main
            o_ref[pl.ds(r0, rem), :] = interior_chunk(base + r0, rem)

    if n_j == 1:
        emit_edge_tile(0)
    else:
        @pl.when(j == 0)
        def _():
            emit_edge_tile(0)

        @pl.when(j == n_j - 1)
        def _():
            emit_edge_tile((n_j - 1) * tt)

        if n_j >= 3:
            @pl.when((j > 0) & (j < n_j - 1))
            def _():
                emit_interior_tile()


# ----------------------------------------------------------------------------
# Wrapper: layout plumbing (flatten + stride-fold reshape, no edge-pad copy)
# ----------------------------------------------------------------------------
def splice_transform(feats, *, lctx=0, rctx=0, subsampling_factor=1,
                     tile_rows=1024):
    """
    Args:
        feats: (N, ..., Ti, F) features
    Returns:
        (N, ..., To, F * (lctx + 1 + rctx)) spliced / subsampled features
    """
    lctx = max(int(lctx), 0)
    rctx = max(int(rctx), 0)
    sub = max(int(subsampling_factor), 1)
    nctx = lctx + rctx + 1

    if feats.ndim < 2:
        raise RuntimeError(
            f"SpliceTransform expects >=2D tensor, got {feats.ndim}D")
    if nctx == 1 and sub == 1:
        return feats  # identity

    lead = feats.shape[:-2]
    T, F = feats.shape[-2], feats.shape[-1]
    B = int(np.prod(lead)) if lead else 1
    itemsize = jnp.dtype(feats.dtype).itemsize
    out_feat = nctx * F

    if nctx == 1:
        # subsample only: no truncation, ceil-length output
        To = -(-T // sub)
        G = To
        T_need = G * sub
    else:
        T_used = T - T % sub          # splice_feature truncates T
        To = T_used // sub
        G = To
        T_need = T_used

    if To == 0 or B == 0:
        return jnp.zeros(lead + (0, out_feat), dtype=feats.dtype)

    x3 = feats.reshape(B, T, F)
    if T_need < T:
        x3 = x3[:, :T_need, :]        # truncation required by the reference
    elif T_need > T:
        # only in the subsample-only corner case (T % sub != 0); pad rows are
        # never read by the kernel (it only touches lane slice 0 of row G-1).
        x3 = jnp.concatenate(
            [x3, jnp.zeros((B, T_need - T, F), dtype=feats.dtype)], axis=1)
    # stride-folded view; a free reshape in the common T % sub == 0 case.
    x_r = x3.reshape(B, G, sub * F)

    qL = -(-lctx // sub)              # ceil(lctx / sub): max backward row offset
    qR = rctx // sub                  # max forward row offset

    align = {4: 8, 2: 16, 1: 32}.get(itemsize, 8)
    prefer_min_tiles = 2 if (B == 1 and To >= 2 * align) else 1
    n_j, tt = _choose_tiles(To, tile_rows, qL, qR, align, prefer_min_tiles)

    # Row-chunk size: keep the assembled (rc, nctx*F) value ~64 KiB (<= ~16
    # vregs) so there is no spill competing with the output stores.
    rc_main = (65536 // max(out_feat * itemsize, 1)) // align * align
    rc_main = min(max(rc_main, align), 256, tt)
    if rc_main <= 0:
        rc_main = tt

    groups = _tap_groups(lctx, rctx, sub)

    kernel = partial(_splice_kernel, F=F, sub=sub, G=G, tt=tt, n_j=n_j,
                     rc_main=rc_main, groups=groups)

    # VMEM budget: input slab + output tile, both double-buffered, plus margin.
    need = 2 * (G * sub * F + tt * out_feat) * itemsize + (2 << 20)
    try:
        vmem_cap = int(pltpu.get_tpu_info().vmem_capacity_bytes)
    except Exception:
        vmem_cap = 64 << 20           # v7x-safe fallback
    vmem_limit = int(min(max(need, 32 << 20), max(32 << 20, vmem_cap - (4 << 20))))

    in_bytes = B * G * sub * F * itemsize
    out_bytes = B * To * out_feat * itemsize

    out = pl.pallas_call(
        kernel,
        out_shape=jax.ShapeDtypeStruct((B, To, out_feat), feats.dtype),
        grid_spec=pltpu.PrefetchScalarGridSpec(
            num_scalar_prefetch=0,
            grid=(B, n_j),
            in_specs=[
                # full per-batch slab; block index changes only with b, so it is
                # DMA'd once per batch row and reused across all time tiles.
                pl.BlockSpec((None, G, sub * F), lambda b, j: (b, 0, 0)),
            ],
            out_specs=pl.BlockSpec((None, tt, out_feat), lambda b, j: (b, j, 0)),
        ),
        compiler_params=pltpu.CompilerParams(
            dimension_semantics=("parallel", "parallel"),
            vmem_limit_bytes=vmem_limit),
        cost_estimate=pl.CostEstimate(flops=0, transcendentals=0,
                                      bytes_accessed=in_bytes + out_bytes),
    )(x_r)

    return out.reshape(lead + (To, out_feat))


class SpliceTransform:
    """Mirror of the PyTorch module; forward == __call__."""

    def __init__(self, lctx=0, rctx=0, subsampling_factor=1):
        self.lctx = max(lctx, 0)
        self.rctx = max(rctx, 0)
        self.subsampling_factor = subsampling_factor

    def dim_scale(self):
        return 1 + self.lctx + self.rctx

    def __call__(self, feats):
        return splice_transform(feats,
                                lctx=self.lctx,
                                rctx=self.rctx,
                                subsampling_factor=self.subsampling_factor)


# ----------------------------------------------------------------------------
# Pure-JAX reference (direct transcription of aps splice_feature + forward).
# ----------------------------------------------------------------------------
def _splice_reference(feats, lctx, rctx, sub):
    lctx, rctx = max(lctx, 0), max(rctx, 0)
    if lctx + rctx > 0:
        T = feats.shape[-2]
        T = T - T % sub
        feats = feats[..., :T, :]
        ctx = []
        for c in range(-lctx, rctx + 1):
            idx = jnp.clip(jnp.arange(c, c + T), 0, T - 1)
            ctx.append(jnp.take(feats, idx, axis=-2))
        feats = jnp.concatenate(ctx, axis=-1)
    if sub != 1:
        feats = feats[..., ::sub, :]
    return feats


if __name__ == "__main__":
    key = jax.random.PRNGKey(0)

    def check(feats, lctx, rctx, sub, tile_rows=1024):
        out = jax.block_until_ready(
            splice_transform(feats, lctx=lctx, rctx=rctx,
                             subsampling_factor=sub, tile_rows=tile_rows))
        ref = _splice_reference(feats, lctx, rctx, sub)
        assert out.shape == ref.shape, (out.shape, ref.shape)
        # pure data movement -> bit-exact
        np.testing.assert_array_equal(np.asarray(out), np.asarray(ref))

    # small 4-D input, as in the module docstring: N x C x Ti x F
    N, C, T, F = 2, 4, 16, 32
    feats4 = jax.random.normal(key, (N, C, T, F), dtype=jnp.float32)

    # 1) splice + subsample (single tile, both edges, T % sub != 0)
    check(feats4, 2, 2, 3)
    # 2) splice only
    check(feats4, 1, 1, 1)
    # 3) subsample only (ceil-length path)
    check(feats4, 0, 0, 3)

    # 4) B == 1 (megacore 2-way time split), partial last tile
    feats_b1 = jax.random.normal(jax.random.PRNGKey(1), (1, 100, 24),
                                 dtype=jnp.float32)
    check(feats_b1, 3, 4, 2, tile_rows=32)

    # 5) multi-tile grid with interior tiles + chunked fori path
    feats_long = jax.random.normal(jax.random.PRNGKey(2), (2, 160, 64),
                                   dtype=jnp.float32)
    check(feats_long, 5, 5, 1, tile_rows=64)

    print("KERNEL_OK")
</pallas_src>

<mosaic_0001>
module attributes {stable_mosaic.version = 11 : i64} {
  func.func @_splice_kernel(%arg0: i32, %arg1: i32, %arg2: memref<1x5x96xf32, #tpu.memory_space<vmem>>, %arg3: memref<1x5x160xf32, #tpu.memory_space<vmem>>) attributes {dimension_semantics = [#tpu.dimension_semantics<parallel>, #tpu.dimension_semantics<parallel>], iteration_bounds = array<i64: 8, 1>, scalar_prefetch = 0 : i64, scratch_operands = 0 : i64, tpu.core_type = #tpu.core_type<tc>, window_params = [{transform_indices = @transform_0, window_bounds = array<i64: 1, 5, 96>}, {transform_indices = @transform_1, window_bounds = array<i64: 1, 5, 160>}]} {
    %c0 = arith.constant 0 : index
    %c0_0 = arith.constant 0 : index
    %c0_1 = arith.constant 0 : index
    %0 = vector.load %arg2[%c0, %c0_0, %c0_1] : memref<1x5x96xf32, #tpu.memory_space<vmem>>, vector<1x1x32xf32>
    %1 = vector.shape_cast %0 : vector<1x1x32xf32> to vector<1x32xf32>
    %c0_2 = arith.constant 0 : index
    %c0_3 = arith.constant 0 : index
    %c0_4 = arith.constant 0 : index
    %2 = vector.load %arg2[%c0_2, %c0_3, %c0_4] : memref<1x5x96xf32, #tpu.memory_space<vmem>>, vector<1x4x96xf32>
    %3 = vector.shape_cast %2 : vector<1x4x96xf32> to vector<4x96xf32>
    %4 = vector.extract_strided_slice %3 {offsets = [0, 32], sizes = [4, 32], strides = [1, 1]} : vector<4x96xf32> to vector<4x32xf32>
    %5 = tpu.concatenate %1, %4 in 0 : vector<1x32xf32>, vector<4x32xf32> -> vector<5x32xf32>
    %6 = vector.extract_strided_slice %3 {offsets = [0, 64], sizes = [4, 32], strides = [1, 1]} : vector<4x96xf32> to vector<4x32xf32>
    %7 = tpu.concatenate %1, %6 in 0 : vector<1x32xf32>, vector<4x32xf32> -> vector<5x32xf32>
    %c0_5 = arith.constant 0 : index
    %c0_6 = arith.constant 0 : index
    %c0_7 = arith.constant 0 : index
    %8 = vector.load %arg2[%c0_5, %c0_6, %c0_7] : memref<1x5x96xf32, #tpu.memory_space<vmem>>, vector<1x5x96xf32>
    %9 = vector.shape_cast %8 : vector<1x5x96xf32> to vector<5x96xf32>
    %10 = vector.extract_strided_slice %9 {offsets = [0, 0], sizes = [5, 32], strides = [1, 1]} : vector<5x96xf32> to vector<5x32xf32>
    %11 = vector.extract_strided_slice %9 {offsets = [0, 32], sizes = [5, 32], strides = [1, 1]} : vector<5x96xf32> to vector<5x32xf32>
    %12 = vector.extract_strided_slice %9 {offsets = [0, 64], sizes = [5, 32], strides = [1, 1]} : vector<5x96xf32> to vector<5x32xf32>
    %13 = tpu.concatenate %5, %7, %10, %11, %12 in 1 : vector<5x32xf32>, vector<5x32xf32>, vector<5x32xf32>, vector<5x32xf32>, vector<5x32xf32> -> vector<5x160xf32>
    %c0_8 = arith.constant 0 : index
    %c0_9 = arith.constant 0 : index
    %c0_10 = arith.constant 0 : index
    %14 = vector.load %arg3[%c0_8, %c0_9, %c0_10] : memref<1x5x160xf32, #tpu.memory_space<vmem>>, vector<1x5x160xf32>
    %15 = vector.shape_cast %14 : vector<1x5x160xf32> to vector<5x160xf32>
    %16 = vector.shape_cast %13 : vector<5x160xf32> to vector<1x5x160xf32>
    tpu.vector_store %arg3[%c0_8, %c0_9, %c0_10], %16 {strides = array<i32>} : memref<1x5x160xf32, #tpu.memory_space<vmem>>, vector<1x5x160xf32>,
    return
  }
  func.func @transform_0(%arg0: i32, %arg1: i32) -> (i32, i32, i32) {
    %c0_i32 = arith.constant 0 : i32
    %c0_i32_0 = arith.constant 0 : i32
    %c0_i32_1 = arith.constant 0 : i32
    return %arg0, %c0_i32, %c0_i32_0 : i32, i32, i32
  }
  func.func @transform_1(%arg0: i32, %arg1: i32) -> (i32, i32, i32) {
    %c0_i32 = arith.constant 0 : i32
    %c0_i32_0 = arith.constant 0 : i32
    return %arg0, %arg1, %c0_i32 : i32, i32, i32
  }
}

</mosaic_0001>

<llo_original>
// kernel: tpu_custom_call.1
$region0: #{tpu_custom_call.1}
  #allocation0 [shape = 'u32[]', space=smem, size = 0x4, offset = 0x4, fixed_abs, tag = 'smem constant byte address 0x4 - core index']
  #allocation1 [shape = 'u32[144,128]{1,0:T(1,128)}', space=vmem, size = 0x12000, scoped, tag = 'internal scratch']
  %s0 = inlined_call_operand.vmem [shape: f32[8,5,96], index: 0, kind: input, shape index: {}]
  %s1 = inlined_call_operand.vmem [shape: f32[8,5,160], index: 1, kind: output, shape index: {}]
  %s2 = sld [smem:[#allocation0]]
  $region37: #{tpu_custom_call.1} parent=0
    _
  %s4 = ssub.s32 1, %s2
  %s5 = scalar_select 0, %s4, %s2
  loop: start=0, step=1, limit=10
  $region2: #{tpu_custom_call.1} parent=0 // loop_pre_header
    _
  $region3: #{tpu_custom_call.1} parent=0 // loop_header
    %s7 = sphi 0, %s11
    %p8 = scmp.ge.s32.totalorder %s7, 10
    %s14 = sphi 0, %s26
    %s15 = sphi 0, %s22
    %s16 = sphi 0, %s14
    %s17 = sphi 0, %s15
    %s18 = sphi 0, %s16
    %s19 = sphi 0, %s17
    %s29 = sphi 0, %s31
    %s32 = sphi 0, %s29
    %s33 = sphi 0, %s32
    %s49 = sphi 0, %s33
    %s57 = sphi 0, %s59
    %s60 = sphi 0, %s57
    %s61 = sphi 0, %s60
    %s77 = sphi 0, %s61
  $region4: #{tpu_custom_call.1} parent=0 // loop_header_branch
    %10 = sbr.rel (%p8) target = $region8
  $region5: #{tpu_custom_call.1} parent=0 // loop_body
    %s12 = ssub.s32 %s7, 1
    %s13 = ssub.s32 %s7, 2
    %s20 = sadd.s32 1, %s15
    %p21 = scmp.ge.s32.totalorder %s20, 1
    %s22 = scalar_select %p21, 0, %s20
    %s23 = sadd.s32 1, %s14
    %s24 = scalar_select %p21, %s23, %s14
    %p25 = scmp.ge.s32.totalorder %s24, 8
    %s26 = scalar_select %p25, 0, %s24
    %s27 = ssub.s32 %s14, %s26
    %p28 = scmp.eq.s32.totalorder %s27, 0
    %s30 = sadd.s32 %s29, 1
    %s31 = scalar_select %p28, %s29, %s30
    %p34 = pneg %p28
    %p35 = scmp.eq.s32.totalorder %s7, 7
    %p36 = por %p34, %p35
    %p37 = scmp.ne.s32.totalorder %s29, %s32
    %p38 = scmp.eq.s32.totalorder %s7, 0
    %p39 = por %p37, %p38
    %p40 = scmp.ne.s32.totalorder %s29, %s32
    %p41 = scmp.eq.s32.totalorder %s12, 7
    %p42 = por %p40, %p41
    %p43 = scmp.ne.s32.totalorder %s32, %s33
    %p44 = scmp.eq.s32.totalorder %s12, 0
    %p45 = por %p43, %p44
    %p46 = scmp.ne.s32.totalorder %s32, %s33
    %p47 = scmp.eq.s32.totalorder %s13, 7
    %p48 = por %p46, %p47
    %p50 = scmp.ne.s32.totalorder %s33, %s49
    %p51 = scmp.eq.s32.totalorder %s13, 0
    %p52 = por %p50, %p51
    %s53 = ssub.s32 %s14, %s26
    %s54 = ssub.s32 %s15, %s22
    %s55 = sor.u32 %s53, %s54
    %p56 = scmp.eq.s32.totalorder %s55, 0
    %s58 = sadd.s32 %s57, 1
    %s59 = scalar_select %p56, %s57, %s58
    %p62 = pneg %p56
    %p63 = scmp.eq.s32.totalorder %s7, 7
    %p64 = por %p62, %p63
    %p65 = scmp.ne.s32.totalorder %s57, %s60
    %p66 = scmp.eq.s32.totalorder %s7, 0
    %p67 = por %p65, %p66
    %p68 = scmp.ne.s32.totalorder %s57, %s60
    %p69 = scmp.eq.s32.totalorder %s12, 7
    %p70 = por %p68, %p69
    %p71 = scmp.ne.s32.totalorder %s60, %s61
    %p72 = scmp.eq.s32.totalorder %s12, 0
    %p73 = por %p71, %p72
    %p74 = scmp.ne.s32.totalorder %s60, %s61
    %p75 = scmp.eq.s32.totalorder %s13, 7
    %p76 = por %p74, %p75
    %p78 = scmp.ne.s32.totalorder %s61, %s77
    %p79 = scmp.eq.s32.totalorder %s13, 0
    %p80 = por %p78, %p79
    %p81 = scmp.le.s32.totalorder 1, %s7
    %p82 = scmp.lt.s32.totalorder %s7, 9
    %p83 = pnand %p81, %p82
    %p84 = pneg %p83
    // Predicated region
    $region9: #{tpu_custom_call.1} parent=5 // pred_check
      _
    $region10: #{tpu_custom_call.1} parent=5 // pred_check_branch
      %86 = sbr.rel (%p83) target = $region12
    $region11: #{tpu_custom_call.1} parent=5 // pred_region
      %s87 = ssub.s32 %s7, 1
    $region12: #{tpu_custom_call.1} parent=5 // pred_fallthru
      _
    %p88 = scmp.lt.s32.totalorder %s7, 8
    // Predicated region
    $region13: #{tpu_custom_call.1} parent=5 // pred_check
      %p89 = pneg %p88
    $region14: #{tpu_custom_call.1} parent=5 // pred_check_branch
      %91 = sbr.rel (%p89) target = $region16
    $region15: #{tpu_custom_call.1} parent=5 // pred_region
      // Predicated region
      $region17: #{tpu_custom_call.1} parent=15 // pred_check
        %p92 = pneg %p39
      $region18: #{tpu_custom_call.1} parent=15 // pred_check_branch
        %94 = sbr.rel (%p92) target = $region20
      $region19: #{tpu_custom_call.1} parent=15 // pred_region
        %p95 = scmp.lt.s32.totalorder %s14, 7
        %s96 = scalar_select %p95, %s14, 7
        %s97 = smul.addr %s96, 8
        %s98 = scalar_lea.vmem %s0, %s97
      $region20: #{tpu_custom_call.1} parent=15 // pred_fallthru
        _
    $region16: #{tpu_custom_call.1} parent=5 // pred_fallthru
      _
    %p99 = scmp.le.s32.totalorder 1, %s7
    %p100 = scmp.lt.s32.totalorder %s7, 9
    %p101 = pnand %p99, %p100
    %p102 = pneg %p101
    // Predicated region
    $region21: #{tpu_custom_call.1} parent=5 // pred_check
      _
    $region22: #{tpu_custom_call.1} parent=5 // pred_check_branch
      %104 = sbr.rel (%p101) target = $region24
    $region23: #{tpu_custom_call.1} parent=5 // pred_region
      %s105 = ssub.s32 %s7, 1
      %p106 = scmp.lt.s32.totalorder %s16, 7
      %s107 = scalar_select %p106, %s16, 7
      %s108 = smul.addr %s107, 8
      %s109 = scalar_lea.vmem %s0, %s108
      %p110 = pneg %p45
      %p111 = pneg %p42
      %p112 = pneg %p73
      %p113 = pneg %p70
      %p114 = scmp.lt.s32.totalorder %s16, 7
      %s115 = scalar_select %p114, %s16, 7
      %p116 = scmp.lt.s32.totalorder %s17, 0
      %s117 = scalar_select %p116, %s17, 0
      %s118 = smul.addr %s117, 2
      %s119 = smul.addr %s115, 2
      %s120 = sadd.s32 %s118, %s119
      %s121 = smul.addr %s120, 8
      %s122 = scalar_lea.vmem %s1, %s121
      %p123 = scmp.lt.s32.totalorder %s16, 7
      %s124 = scalar_select %p123, %s16, 7
      %s125 = smul.addr %s124, 8
      %s126 = scalar_lea.vmem %s0, %s125
      %p127 = scmp.lt.s32.totalorder %s16, 7
      %s128 = scalar_select %p127, %s16, 7
      %p129 = scmp.lt.s32.totalorder %s17, 0
      %s130 = scalar_select %p129, %s17, 0
      %s131 = smul.addr %s130, 2
      %s132 = smul.addr %s128, 2
      %s133 = sadd.s32 %s131, %s132
      %s134 = smul.addr %s133, 8
      %s135 = scalar_lea.vmem %s1, %s134
      %v136 = vld [vmem:[%s126] sm:$0x1]
      %v137 = vld [vmem:[%s126] sm:$0xf]
      %v139 = vrot.slane %v137, 7
      %140 = vrot.lane.b32.xlu0 %v139, 96
      %v141 = vpop.permute.xlu0 %140
      %vm143 = vcmask 1040384
      %v144 = vsel %vm143, %v136, %v141
      %145 = vrot.lane.b32.xlu0 %v139, 64
      %v146 = vpop.permute.xlu0 %145
      %v148 = vsel %vm143, %v136, %v146
      %v149 = vld [vmem:[%s126] sm:$0x1f]
      %151 = vrot.lane.b32.xlu0 %v148, 32
      %v152 = vpop.permute.xlu0 %151
      %155 = vrot.lane.b32.xlu0 %v149, 64
      %v156 = vpop.permute.xlu0 %155
      %vm158 = vcmask 261120
      %v159 = vsel %vm158, %v144, %v152
      %vm160 = vcmask 523264
      %v161 = vsel %vm160, %v159, %v156
      %vm162 = vcmask 785408
      %v163 = vsel %vm162, %v161, %v156
      %164 = vst [vmem:[%s135] sm:$0x1f] %v163
      %vm165 = vcmask 258048
      %166 = vst.msk [vmem:[%s135 + $0x8] sm:$0x1f] %vm165, %v156
      %p167 = scmp.lt.s32.totalorder %s16, 7
      %s168 = scalar_select %p167, %s16, 7
      %p169 = scmp.lt.s32.totalorder %s17, 0
      %s170 = scalar_select %p169, %s17, 0
      %s171 = smul.addr %s170, 2
      %s172 = smul.addr %s168, 2
      %s173 = sadd.s32 %s171, %s172
      %s174 = smul.addr %s173, 8
      %s175 = scalar_lea.vmem %s1, %s174
      // Predicated region
      $region25: #{tpu_custom_call.1} parent=23 // pred_check
        %p176 = pneg %p70
      $region26: #{tpu_custom_call.1} parent=23 // pred_check_branch
        %178 = sbr.rel (%p176) target = $region28
      $region27: #{tpu_custom_call.1} parent=23 // pred_region
        _
      $region28: #{tpu_custom_call.1} parent=23 // pred_fallthru
        _
    $region24: #{tpu_custom_call.1} parent=5 // pred_fallthru
      _
    %p179 = scmp.le.s32.totalorder 2, %s7
    // Predicated region
    $region29: #{tpu_custom_call.1} parent=5 // pred_check
      %p180 = pneg %p179
    $region30: #{tpu_custom_call.1} parent=5 // pred_check_branch
      %182 = sbr.rel (%p180) target = $region32
    $region31: #{tpu_custom_call.1} parent=5 // pred_region
      %s183 = ssub.s32 %s7, 2
      // Predicated region
      $region33: #{tpu_custom_call.1} parent=31 // pred_check
        %p184 = pneg %p76
      $region34: #{tpu_custom_call.1} parent=31 // pred_check_branch
        %186 = sbr.rel (%p184) target = $region36
      $region35: #{tpu_custom_call.1} parent=31 // pred_region
        %p187 = scmp.lt.s32.totalorder %s18, 7
        %s188 = scalar_select %p187, %s18, 7
        %p189 = scmp.lt.s32.totalorder %s19, 0
        %s190 = scalar_select %p189, %s19, 0
        %s191 = smul.addr %s190, 2
        %s192 = smul.addr %s188, 2
        %s193 = sadd.s32 %s191, %s192
        %s194 = smul.addr %s193, 8
        %s195 = scalar_lea.vmem %s1, %s194
      $region36: #{tpu_custom_call.1} parent=31 // pred_fallthru
        _
    $region32: #{tpu_custom_call.1} parent=5 // pred_fallthru
      _
  $region6: #{tpu_custom_call.1} parent=0 // loop_footer
    %s11 = sadd.s32 1, %s7
  $region7: #{tpu_custom_call.1} parent=0 // loop_footer_branch
    %6 = sbr.rel target = $region3
  $region8: #{tpu_custom_call.1} parent=0 // loop_exit
    _

</llo_original>
